<compile_context>
chip_gen: v6e
topology: v6e:2x2x1
jax: 0.10.0
libtpu: 0.0.40
codegen_flags: <defaults>
</compile_context>

<pallas_src>
import jax
import jax.numpy as jnp
from jax.experimental import pallas as pl
from jax.experimental.pallas import tpu as pltpu

LANES = 128
SUBLANES = 8


def _round_up(x, m):
    return ((x + m - 1) // m) * m


_VMEM_LIMIT = None


def _pick_vmem_limit():
    """Per-generation VMEM cap for the pipelined blocks (leaves headroom)."""
    global _VMEM_LIMIT
    if _VMEM_LIMIT is None:
        cap = None
        try:
            cap = getattr(pltpu.get_tpu_info(), "vmem_capacity_bytes", None)
        except Exception:
            cap = None
        if cap is not None and cap > 64 * 1024 * 1024:
            _VMEM_LIMIT = 96 * 1024 * 1024   # v5e / v6e: 128 MiB physical VMEM
        else:
            _VMEM_LIMIT = 48 * 1024 * 1024   # v7x (64 MiB physical) or unknown
    return _VMEM_LIMIT


def _outconv_vpu_kernel(w_ref, b_ref, x_ref, o_ref):
    # w_ref: (C_out, C_in) f32 in SMEM
    # b_ref: (C_out,)      f32 in SMEM
    # x_ref: (1, C_in, TS, 128) in VMEM
    # o_ref: (1, C_out, TS, 128) in VMEM
    c_out, c_in = w_ref.shape
    accs = [None] * c_out
    # Channel loads hoisted out of the output-channel loop: each input-channel
    # tile is read from VMEM exactly once (c_in vld tiles, not c_in*c_out).
    for c in range(c_in):
        xc = x_ref[0, c, :, :].astype(jnp.float32)
        for o in range(c_out):
            t = w_ref[o, c] * xc
            accs[o] = t if accs[o] is None else accs[o] + t
    for o in range(c_out):
        o_ref[0, o, :, :] = (accs[o] + b_ref[o]).astype(o_ref.dtype)


def _outconv_mxu_kernel(w_ref, b_ref, x_ref, o_ref):
    # w_ref: (C_out, C_in) f32 in VMEM
    # b_ref: (C_out, 1)    f32 in VMEM
    # x_ref: (1, C_in, TS_HW) in VMEM
    # o_ref: (1, C_out, TS_HW) in VMEM
    x = x_ref[0].astype(jnp.float32)                      # (C_in, TS_HW)
    acc = jnp.dot(w_ref[...], x, preferred_element_type=jnp.float32)
    o_ref[0] = (acc + b_ref[...]).astype(o_ref.dtype)


@jax.jit
def outconv_forward(x_nchw, weight, bias):
    """1x1 conv forward matching nn.Conv2d(in_ch, out_ch, kernel_size=1).

    Args:
      x_nchw: (N, C_in, H, W) input.
      weight: (C_out, C_in, 1, 1) conv weight.
      bias:   (C_out,) conv bias.
    Returns:
      (N, C_out, H, W) output.
    """
    n, c_in, h, w = x_nchw.shape
    c_out = weight.shape[0]
    hw = h * w
    itemsize = x_nchw.dtype.itemsize

    vmem_limit = _pick_vmem_limit()
    blocks_budget = vmem_limit - 8 * 1024 * 1024   # headroom for scratch/weights

    # Compute-path switch.  Tiny channel counts: per-channel VPU FMAs on
    # lane-dense (TS, 128) tiles.  Wider channels (the scalar-FMA chain would
    # become VALU-bound before the HBM roofline) or a non-128-aligned spatial
    # extent (avoids pad/slice HBM round trips): MXU contraction over C_in.
    valu_threshold = 5.0 if itemsize >= 4 else 2.5
    macs_per_elem = (c_in * c_out) / float(c_in + c_out)
    use_vpu = (hw % LANES == 0
               and macs_per_elem <= valu_threshold
               and c_in * c_out <= 512)          # also bounds Python unrolling

    cost = pl.CostEstimate(
        flops=2 * n * hw * c_in * c_out,
        transcendentals=0,
        bytes_accessed=n * hw * (c_in + c_out) * itemsize,
    )
    cparams = pltpu.CompilerParams(
        dimension_semantics=("parallel", "parallel"),
        vmem_limit_bytes=vmem_limit,
    )

    if use_vpu:
        # ---- VPU path: (N, C_in, S, 128) view, free reshape (no pad). ----
        s = hw // LANES
        x4 = x_nchw.reshape(n, c_in, s, LANES)

        # VMEM-budgeted spatial tile: double-buffered input + output blocks.
        bytes_per_row = 2 * (c_in + c_out) * LANES * itemsize
        ts = max(SUBLANES, (blocks_budget // bytes_per_row) // SUBLANES * SUBLANES)
        ts = min(ts, s)
        # Guarantee >= 2 grid steps for single-image inputs (v7x: 2 TCs; a
        # 1-step grid also cannot overlap DMA with compute).
        if n == 1 and s >= 2 * SUBLANES:
            ts = min(ts, _round_up((s + 1) // 2, SUBLANES))
        grid = (n, pl.cdiv(s, ts))

        w_mat = weight.reshape(c_out, c_in).astype(jnp.float32)
        b_vec = bias.reshape(c_out).astype(jnp.float32)

        out4 = pl.pallas_call(
            _outconv_vpu_kernel,
            out_shape=jax.ShapeDtypeStruct((n, c_out, s, LANES), x_nchw.dtype),
            grid_spec=pltpu.PrefetchScalarGridSpec(
                num_scalar_prefetch=0,
                grid=grid,
                in_specs=[
                    pl.BlockSpec(memory_space=pltpu.MemorySpace.SMEM),  # weight
                    pl.BlockSpec(memory_space=pltpu.MemorySpace.SMEM),  # bias
                    pl.BlockSpec((1, c_in, ts, LANES), lambda i, j: (i, 0, j, 0)),
                ],
                out_specs=pl.BlockSpec((1, c_out, ts, LANES),
                                       lambda i, j: (i, 0, j, 0)),
            ),
            compiler_params=cparams,
            cost_estimate=cost,
        )(w_mat, b_vec, x4)
        return out4.reshape(n, c_out, h, w)

    # ---- MXU path: (N, C_in, HW) view, no pad; partial tail block masked. ----
    x3 = x_nchw.reshape(n, c_in, hw)

    bytes_per_col = 2 * (c_in + c_out) * itemsize
    ts_hw = max(LANES, (blocks_budget // bytes_per_col) // LANES * LANES)
    if n == 1 and hw >= 2 * LANES:
        ts_hw = min(ts_hw, _round_up((hw + 1) // 2, LANES))
    if ts_hw >= hw:
        ts_hw = hw   # single full-extent block along HW (may be unaligned)
    grid = (n, pl.cdiv(hw, ts_hw))

    w_mat = weight.reshape(c_out, c_in).astype(jnp.float32)
    b_col = bias.reshape(c_out, 1).astype(jnp.float32)

    out3 = pl.pallas_call(
        _outconv_mxu_kernel,
        out_shape=jax.ShapeDtypeStruct((n, c_out, hw), x_nchw.dtype),
        grid_spec=pltpu.PrefetchScalarGridSpec(
            num_scalar_prefetch=0,
            grid=grid,
            in_specs=[
                pl.BlockSpec((c_out, c_in), lambda i, j: (0, 0)),  # weight (VMEM)
                pl.BlockSpec((c_out, 1), lambda i, j: (0, 0)),     # bias   (VMEM)
                pl.BlockSpec((1, c_in, ts_hw), lambda i, j: (i, 0, j)),
            ],
            out_specs=pl.BlockSpec((1, c_out, ts_hw), lambda i, j: (i, 0, j)),
        ),
        compiler_params=cparams,
        cost_estimate=cost,
    )(w_mat, b_col, x3)
    return out3.reshape(n, c_out, h, w)


if __name__ == "__main__":
    key = jax.random.PRNGKey(0)
    kx, kw, kb = jax.random.split(key, 3)

    def ref_conv(x, wgt, b):
        c_out, c_in = wgt.shape[0], wgt.shape[1]
        return (jnp.einsum("nchw,oc->nohw", x, wgt.reshape(c_out, c_in))
                + b.reshape(1, c_out, 1, 1))

    # 1) Small aligned case (HW % 128 == 0, tiny channels) -> VPU path.
    N, C_IN, C_OUT, H, W = 2, 4, 3, 16, 16
    x = jax.random.normal(kx, (N, C_IN, H, W), dtype=jnp.float32)
    wgt = jax.random.normal(kw, (C_OUT, C_IN, 1, 1), dtype=jnp.float32) * 0.1
    b = jax.random.normal(kb, (C_OUT,), dtype=jnp.float32) * 0.1
    out = jax.block_until_ready(outconv_forward(x, wgt, b))
    assert out.shape == (N, C_OUT, H, W)
    assert jnp.allclose(out, ref_conv(x, wgt, b), atol=1e-5, rtol=1e-5)

    # NOTE: the MXU-path checks below use looser tolerances because the MXU's
    # default precision may use bf16 passes for f32 operands (same as XLA's
    # default conv/dot behavior on TPU); genuine bugs produce O(0.1+) errors.

    # 2) Non-128-aligned spatial extent (no pad/slice) -> MXU path, 1 block.
    x2 = jax.random.normal(kx, (N, C_IN, 10, 10), dtype=jnp.float32)
    out2 = jax.block_until_ready(outconv_forward(x2, wgt, b))
    assert jnp.allclose(out2, ref_conv(x2, wgt, b), atol=3e-2, rtol=3e-2)

    # 3) Non-aligned, single image -> MXU path with a masked partial tail block.
    x3 = jax.random.normal(kx, (1, C_IN, 18, 18), dtype=jnp.float32)
    out3 = jax.block_until_ready(outconv_forward(x3, wgt, b))
    assert jnp.allclose(out3, ref_conv(x3, wgt, b), atol=3e-2, rtol=3e-2)

    # 4) Wider channels (VALU-bound regime for scalar FMAs) -> MXU path, aligned.
    C_IN4, C_OUT4 = 32, 16
    x4 = jax.random.normal(kx, (2, C_IN4, 16, 16), dtype=jnp.float32)
    w4 = jax.random.normal(kw, (C_OUT4, C_IN4, 1, 1), dtype=jnp.float32) * 0.1
    b4 = jax.random.normal(kb, (C_OUT4,), dtype=jnp.float32) * 0.1
    out4 = jax.block_until_ready(outconv_forward(x4, w4, b4))
    assert jnp.allclose(out4, ref_conv(x4, w4, b4), atol=6e-2, rtol=6e-2)

    print("KERNEL_OK")
</pallas_src>

<mosaic_0001>
module attributes {stable_mosaic.version = 11 : i64} {
  func.func @_outconv_vpu_kernel(%arg0: i32, %arg1: i32, %arg2: memref<3x4xf32, #tpu.memory_space<smem>>, %arg3: memref<3xf32, #tpu.memory_space<smem>>, %arg4: memref<1x4x2x128xf32, #tpu.memory_space<vmem>>, %arg5: memref<1x3x2x128xf32, #tpu.memory_space<vmem>>) attributes {dimension_semantics = [#tpu.dimension_semantics<parallel>, #tpu.dimension_semantics<parallel>], iteration_bounds = array<i64: 2, 1>, scalar_prefetch = 0 : i64, scratch_operands = 0 : i64, tpu.core_type = #tpu.core_type<tc>, window_params = [{transform_indices = @transform_0, window_bounds = array<i64: 3, 4>}, {transform_indices = @transform_1, window_bounds = array<i64: 3>}, {transform_indices = @transform_2, window_bounds = array<i64: 1, 4, 2, 128>}, {transform_indices = @transform_3, window_bounds = array<i64: 1, 3, 2, 128>}]} {
    %c0 = arith.constant 0 : index
    %c0_0 = arith.constant 0 : index
    %c0_1 = arith.constant 0 : index
    %c0_2 = arith.constant 0 : index
    %0 = vector.load %arg4[%c0, %c0_0, %c0_1, %c0_2] : memref<1x4x2x128xf32, #tpu.memory_space<vmem>>, vector<1x1x2x128xf32>
    %1 = vector.shape_cast %0 : vector<1x1x2x128xf32> to vector<2x128xf32>
    %c0_3 = arith.constant 0 : index
    %c0_4 = arith.constant 0 : index
    %2 = memref.load %arg2[%c0_3, %c0_4] : memref<3x4xf32, #tpu.memory_space<smem>>
    %3 = vector.broadcast %2 : f32 to vector<2x128xf32>
    %4 = arith.mulf %3, %1 : vector<2x128xf32>
    %c1 = arith.constant 1 : index
    %c0_5 = arith.constant 0 : index
    %5 = memref.load %arg2[%c1, %c0_5] : memref<3x4xf32, #tpu.memory_space<smem>>
    %6 = vector.broadcast %5 : f32 to vector<2x128xf32>
    %7 = arith.mulf %6, %1 : vector<2x128xf32>
    %c2 = arith.constant 2 : index
    %c0_6 = arith.constant 0 : index
    %8 = memref.load %arg2[%c2, %c0_6] : memref<3x4xf32, #tpu.memory_space<smem>>
    %9 = vector.broadcast %8 : f32 to vector<2x128xf32>
    %10 = arith.mulf %9, %1 : vector<2x128xf32>
    %c0_7 = arith.constant 0 : index
    %c1_8 = arith.constant 1 : index
    %c0_9 = arith.constant 0 : index
    %c0_10 = arith.constant 0 : index
    %11 = vector.load %arg4[%c0_7, %c1_8, %c0_9, %c0_10] : memref<1x4x2x128xf32, #tpu.memory_space<vmem>>, vector<1x1x2x128xf32>
    %12 = vector.shape_cast %11 : vector<1x1x2x128xf32> to vector<2x128xf32>
    %c0_11 = arith.constant 0 : index
    %c1_12 = arith.constant 1 : index
    %13 = memref.load %arg2[%c0_11, %c1_12] : memref<3x4xf32, #tpu.memory_space<smem>>
    %14 = vector.broadcast %13 : f32 to vector<2x128xf32>
    %15 = arith.mulf %14, %12 : vector<2x128xf32>
    %16 = arith.addf %4, %15 : vector<2x128xf32>
    %c1_13 = arith.constant 1 : index
    %c1_14 = arith.constant 1 : index
    %17 = memref.load %arg2[%c1_13, %c1_14] : memref<3x4xf32, #tpu.memory_space<smem>>
    %18 = vector.broadcast %17 : f32 to vector<2x128xf32>
    %19 = arith.mulf %18, %12 : vector<2x128xf32>
    %20 = arith.addf %7, %19 : vector<2x128xf32>
    %c2_15 = arith.constant 2 : index
    %c1_16 = arith.constant 1 : index
    %21 = memref.load %arg2[%c2_15, %c1_16] : memref<3x4xf32, #tpu.memory_space<smem>>
    %22 = vector.broadcast %21 : f32 to vector<2x128xf32>
    %23 = arith.mulf %22, %12 : vector<2x128xf32>
    %24 = arith.addf %10, %23 : vector<2x128xf32>
    %c0_17 = arith.constant 0 : index
    %c2_18 = arith.constant 2 : index
    %c0_19 = arith.constant 0 : index
    %c0_20 = arith.constant 0 : index
    %25 = vector.load %arg4[%c0_17, %c2_18, %c0_19, %c0_20] : memref<1x4x2x128xf32, #tpu.memory_space<vmem>>, vector<1x1x2x128xf32>
    %26 = vector.shape_cast %25 : vector<1x1x2x128xf32> to vector<2x128xf32>
    %c0_21 = arith.constant 0 : index
    %c2_22 = arith.constant 2 : index
    %27 = memref.load %arg2[%c0_21, %c2_22] : memref<3x4xf32, #tpu.memory_space<smem>>
    %28 = vector.broadcast %27 : f32 to vector<2x128xf32>
    %29 = arith.mulf %28, %26 : vector<2x128xf32>
    %30 = arith.addf %16, %29 : vector<2x128xf32>
    %c1_23 = arith.constant 1 : index
    %c2_24 = arith.constant 2 : index
    %31 = memref.load %arg2[%c1_23, %c2_24] : memref<3x4xf32, #tpu.memory_space<smem>>
    %32 = vector.broadcast %31 : f32 to vector<2x128xf32>
    %33 = arith.mulf %32, %26 : vector<2x128xf32>
    %34 = arith.addf %20, %33 : vector<2x128xf32>
    %c2_25 = arith.constant 2 : index
    %c2_26 = arith.constant 2 : index
    %35 = memref.load %arg2[%c2_25, %c2_26] : memref<3x4xf32, #tpu.memory_space<smem>>
    %36 = vector.broadcast %35 : f32 to vector<2x128xf32>
    %37 = arith.mulf %36, %26 : vector<2x128xf32>
    %38 = arith.addf %24, %37 : vector<2x128xf32>
    %c0_27 = arith.constant 0 : index
    %c3 = arith.constant 3 : index
    %c0_28 = arith.constant 0 : index
    %c0_29 = arith.constant 0 : index
    %39 = vector.load %arg4[%c0_27, %c3, %c0_28, %c0_29] : memref<1x4x2x128xf32, #tpu.memory_space<vmem>>, vector<1x1x2x128xf32>
    %40 = vector.shape_cast %39 : vector<1x1x2x128xf32> to vector<2x128xf32>
    %c0_30 = arith.constant 0 : index
    %c3_31 = arith.constant 3 : index
    %41 = memref.load %arg2[%c0_30, %c3_31] : memref<3x4xf32, #tpu.memory_space<smem>>
    %42 = vector.broadcast %41 : f32 to vector<2x128xf32>
    %43 = arith.mulf %42, %40 : vector<2x128xf32>
    %44 = arith.addf %30, %43 : vector<2x128xf32>
    %c1_32 = arith.constant 1 : index
    %c3_33 = arith.constant 3 : index
    %45 = memref.load %arg2[%c1_32, %c3_33] : memref<3x4xf32, #tpu.memory_space<smem>>
    %46 = vector.broadcast %45 : f32 to vector<2x128xf32>
    %47 = arith.mulf %46, %40 : vector<2x128xf32>
    %48 = arith.addf %34, %47 : vector<2x128xf32>
    %c2_34 = arith.constant 2 : index
    %c3_35 = arith.constant 3 : index
    %49 = memref.load %arg2[%c2_34, %c3_35] : memref<3x4xf32, #tpu.memory_space<smem>>
    %50 = vector.broadcast %49 : f32 to vector<2x128xf32>
    %51 = arith.mulf %50, %40 : vector<2x128xf32>
    %52 = arith.addf %38, %51 : vector<2x128xf32>
    %c0_36 = arith.constant 0 : index
    %53 = memref.load %arg3[%c0_36] : memref<3xf32, #tpu.memory_space<smem>>
    %54 = vector.broadcast %53 : f32 to vector<2x128xf32>
    %55 = arith.addf %44, %54 : vector<2x128xf32>
    %c0_37 = arith.constant 0 : index
    %c0_38 = arith.constant 0 : index
    %c0_39 = arith.constant 0 : index
    %c0_40 = arith.constant 0 : index
    %56 = vector.load %arg5[%c0_37, %c0_38, %c0_39, %c0_40] : memref<1x3x2x128xf32, #tpu.memory_space<vmem>>, vector<1x1x2x128xf32>
    %57 = vector.shape_cast %56 : vector<1x1x2x128xf32> to vector<2x128xf32>
    %58 = vector.shape_cast %55 : vector<2x128xf32> to vector<1x1x2x128xf32>
    tpu.vector_store %arg5[%c0_37, %c0_38, %c0_39, %c0_40], %58 {strides = array<i32>} : memref<1x3x2x128xf32, #tpu.memory_space<vmem>>, vector<1x1x2x128xf32>,
    %c1_41 = arith.constant 1 : index
    %59 = memref.load %arg3[%c1_41] : memref<3xf32, #tpu.memory_space<smem>>
    %60 = vector.broadcast %59 : f32 to vector<2x128xf32>
    %61 = arith.addf %48, %60 : vector<2x128xf32>
    %c0_42 = arith.constant 0 : index
    %c1_43 = arith.constant 1 : index
    %c0_44 = arith.constant 0 : index
    %c0_45 = arith.constant 0 : index
    %62 = vector.load %arg5[%c0_42, %c1_43, %c0_44, %c0_45] : memref<1x3x2x128xf32, #tpu.memory_space<vmem>>, vector<1x1x2x128xf32>
    %63 = vector.shape_cast %62 : vector<1x1x2x128xf32> to vector<2x128xf32>
    %64 = vector.shape_cast %61 : vector<2x128xf32> to vector<1x1x2x128xf32>
    tpu.vector_store %arg5[%c0_42, %c1_43, %c0_44, %c0_45], %64 {strides = array<i32>} : memref<1x3x2x128xf32, #tpu.memory_space<vmem>>, vector<1x1x2x128xf32>,
    %c2_46 = arith.constant 2 : index
    %65 = memref.load %arg3[%c2_46] : memref<3xf32, #tpu.memory_space<smem>>
    %66 = vector.broadcast %65 : f32 to vector<2x128xf32>
    %67 = arith.addf %52, %66 : vector<2x128xf32>
    %c0_47 = arith.constant 0 : index
    %c2_48 = arith.constant 2 : index
    %c0_49 = arith.constant 0 : index
    %c0_50 = arith.constant 0 : index
    %68 = vector.load %arg5[%c0_47, %c2_48, %c0_49, %c0_50] : memref<1x3x2x128xf32, #tpu.memory_space<vmem>>, vector<1x1x2x128xf32>
    %69 = vector.shape_cast %68 : vector<1x1x2x128xf32> to vector<2x128xf32>
    %70 = vector.shape_cast %67 : vector<2x128xf32> to vector<1x1x2x128xf32>
    tpu.vector_store %arg5[%c0_47, %c2_48, %c0_49, %c0_50], %70 {strides = array<i32>} : memref<1x3x2x128xf32, #tpu.memory_space<vmem>>, vector<1x1x2x128xf32>,
    return
  }
  func.func @transform_0(%arg0: i32, %arg1: i32) -> (i32, i32) {
    %c0_i32 = arith.constant 0 : i32
    %c0_i32_0 = arith.constant 0 : i32
    %c0_i32_1 = arith.constant 0 : i32
    return %c0_i32, %c0_i32_0 : i32, i32
  }
  func.func @transform_1(%arg0: i32, %arg1: i32) -> i32 {
    %c0_i32 = arith.constant 0 : i32
    %c0_i32_0 = arith.constant 0 : i32
    return %c0_i32 : i32
  }
  func.func @transform_2(%arg0: i32, %arg1: i32) -> (i32, i32, i32, i32) {
    %c0_i32 = arith.constant 0 : i32
    %c0_i32_0 = arith.constant 0 : i32
    %c0_i32_1 = arith.constant 0 : i32
    return %arg0, %c0_i32, %arg1, %c0_i32_0 : i32, i32, i32, i32
  }
  func.func @transform_3(%arg0: i32, %arg1: i32) -> (i32, i32, i32, i32) {
    %c0_i32 = arith.constant 0 : i32
    %c0_i32_0 = arith.constant 0 : i32
    %c0_i32_1 = arith.constant 0 : i32
    return %arg0, %c0_i32, %arg1, %c0_i32_0 : i32, i32, i32, i32
  }
}

</mosaic_0001>

<llo_original>
// kernel: outconv_forward.1
$region0: #{outconv_forward.1}
  #allocation0 [shape = 'u32[]', space=smem, size = 0x4, offset = 0x4, fixed_abs, tag = 'smem constant byte address 0x4 - core index']
  #allocation1 [shape = 'u32[144,128]{1,0:T(1,128)}', space=vmem, size = 0x12000, scoped, tag = 'internal scratch']
  %s0 = inlined_call_operand.vmem [shape: f32[3,4], index: 0, kind: input, shape index: {}]
  %s1 = inlined_call_operand.vmem [shape: f32[3], index: 1, kind: input, shape index: {}]
  %s2 = inlined_call_operand.vmem [shape: f32[2,4,2,128], index: 2, kind: input, shape index: {}]
  %s3 = inlined_call_operand.vmem [shape: f32[2,3,2,128], index: 3, kind: output, shape index: {}]
  %s4 = sld [smem:[#allocation0]]
  $region53: #{outconv_forward.1} parent=0
    _
  %s6 = ssub.s32 1, %s4
  %s7 = scalar_select 0, %s6, %s4
  $region1: #{outconv_forward.1} parent=0
    #allocation2 [shape = 'u8[2048]{0}', space=smem, size = 0x800, scoped, tag = 'input window, operand 0, single buffered']
    #allocation3 [shape = 's32[2]{0}', space=sflag, size = 0x8, scoped, tag = 'scoped memory for outconv_forward.1']
    #allocation4 [shape = 'u8[512]{0}', space=smem, size = 0x200, scoped, tag = 'input window, operand 1, single buffered']
    #allocation5 [shape = 's32[1]{0}', space=sflag, size = 0x4, scoped, tag = 'scoped memory for outconv_forward.1']
    %8 = vsyncpa [#allocation3], 0
    %9 = vsyncpa [#allocation5], 0
    loop: start=0, step=1, limit=4
    $region2: #{outconv_forward.1} parent=1 // loop_pre_header
      _
    $region3: #{outconv_forward.1} parent=1 // loop_header
      %s11 = sphi 0, %s15
      %p12 = scmp.ge.s32.totalorder %s11, 4
      %s18 = sphi 0, %s30
      %s19 = sphi 0, %s26
      %s20 = sphi 0, %s18
      %s21 = sphi 0, %s19
      %s22 = sphi 0, %s20
      %s23 = sphi 0, %s21
      %s31 = sphi 0, %s31
      %s33 = sphi 0, %s31
      %s34 = sphi 0, %s33
      %s48 = sphi 0, %s34
      %s52 = sphi 0, %s52
      %s54 = sphi 0, %s52
      %s55 = sphi 0, %s54
      %s69 = sphi 0, %s55
      %s77 = sphi 0, %s79
      %s80 = sphi 0, %s77
      %s81 = sphi 0, %s80
      %s97 = sphi 0, %s81
      %s105 = sphi 0, %s107
      %s108 = sphi 0, %s105
      %s109 = sphi 0, %s108
      %s125 = sphi 0, %s109
    $region4: #{outconv_forward.1} parent=1 // loop_header_branch
      %14 = sbr.rel (%p12) target = $region8
    $region5: #{outconv_forward.1} parent=1 // loop_body
      %s16 = ssub.s32 %s11, 1
      %s17 = ssub.s32 %s11, 2
      %s24 = sadd.s32 1, %s19
      %p25 = scmp.ge.s32.totalorder %s24, 1
      %s26 = scalar_select %p25, 0, %s24
      %s27 = sadd.s32 1, %s18
      %s28 = scalar_select %p25, %s27, %s18
      %p29 = scmp.ge.s32.totalorder %s28, 2
      %s30 = scalar_select %p29, 0, %s28
      %s32 = sadd.s32 %s31, 1
      %p35 = scmp.eq.s32.totalorder %s11, 1
      %p36 = scmp.ne.s32.totalorder %s31, %s33
      %p37 = scmp.eq.s32.totalorder %s11, 0
      %p38 = por %p36, %p37
      %p39 = scmp.ne.s32.totalorder %s31, %s33
      %p40 = scmp.eq.s32.totalorder %s16, 1
      %p41 = por %p39, %p40
      %p42 = scmp.ne.s32.totalorder %s33, %s34
      %p43 = scmp.eq.s32.totalorder %s16, 0
      %p44 = por %p42, %p43
      %p45 = scmp.ne.s32.totalorder %s33, %s34
      %p46 = scmp.eq.s32.totalorder %s17, 1
      %p47 = por %p45, %p46
      %p49 = scmp.ne.s32.totalorder %s34, %s48
      %p50 = scmp.eq.s32.totalorder %s17, 0
      %p51 = por %p49, %p50
      %s53 = sadd.s32 %s52, 1
      %p56 = scmp.eq.s32.totalorder %s11, 1
      %p57 = scmp.ne.s32.totalorder %s52, %s54
      %p58 = scmp.eq.s32.totalorder %s11, 0
      %p59 = por %p57, %p58
      %p60 = scmp.ne.s32.totalorder %s52, %s54
      %p61 = scmp.eq.s32.totalorder %s16, 1
      %p62 = por %p60, %p61
      %p63 = scmp.ne.s32.totalorder %s54, %s55
      %p64 = scmp.eq.s32.totalorder %s16, 0
      %p65 = por %p63, %p64
      %p66 = scmp.ne.s32.totalorder %s54, %s55
      %p67 = scmp.eq.s32.totalorder %s17, 1
      %p68 = por %p66, %p67
      %p70 = scmp.ne.s32.totalorder %s55, %s69
      %p71 = scmp.eq.s32.totalorder %s17, 0
      %p72 = por %p70, %p71
      %s73 = ssub.s32 %s18, %s30
      %s74 = ssub.s32 %s19, %s26
      %s75 = sor.u32 %s73, %s74
      %p76 = scmp.eq.s32.totalorder %s75, 0
      %s78 = sadd.s32 %s77, 1
      %s79 = scalar_select %p76, %s77, %s78
      %p82 = pneg %p76
      %p83 = scmp.eq.s32.totalorder %s11, 1
      %p84 = por %p82, %p83
      %p85 = scmp.ne.s32.totalorder %s77, %s80
      %p86 = scmp.eq.s32.totalorder %s11, 0
      %p87 = por %p85, %p86
      %p88 = scmp.ne.s32.totalorder %s77, %s80
      %p89 = scmp.eq.s32.totalorder %s16, 1
      %p90 = por %p88, %p89
      %p91 = scmp.ne.s32.totalorder %s80, %s81
      %p92 = scmp.eq.s32.totalorder %s16, 0
      %p93 = por %p91, %p92
      %p94 = scmp.ne.s32.totalorder %s80, %s81
      %p95 = scmp.eq.s32.totalorder %s17, 1
      %p96 = por %p94, %p95
      %p98 = scmp.ne.s32.totalorder %s81, %s97
      %p99 = scmp.eq.s32.totalorder %s17, 0
      %p100 = por %p98, %p99
      %s101 = ssub.s32 %s18, %s30
      %s102 = ssub.s32 %s19, %s26
      %s103 = sor.u32 %s101, %s102
      %p104 = scmp.eq.s32.totalorder %s103, 0
      %s106 = sadd.s32 %s105, 1
      %s107 = scalar_select %p104, %s105, %s106
      %p110 = pneg %p104
      %p111 = scmp.eq.s32.totalorder %s11, 1
      %p112 = por %p110, %p111
      %p113 = scmp.ne.s32.totalorder %s105, %s108
      %p114 = scmp.eq.s32.totalorder %s11, 0
      %p115 = por %p113, %p114
      %p116 = scmp.ne.s32.totalorder %s105, %s108
      %p117 = scmp.eq.s32.totalorder %s16, 1
      %p118 = por %p116, %p117
      %p119 = scmp.ne.s32.totalorder %s108, %s109
      %p120 = scmp.eq.s32.totalorder %s16, 0
      %p121 = por %p119, %p120
      %p122 = scmp.ne.s32.totalorder %s108, %s109
      %p123 = scmp.eq.s32.totalorder %s17, 1
      %p124 = por %p122, %p123
      %p126 = scmp.ne.s32.totalorder %s109, %s125
      %p127 = scmp.eq.s32.totalorder %s17, 0
      %p128 = por %p126, %p127
      %p129 = scmp.le.s32.totalorder 1, %s11
      %p130 = scmp.lt.s32.totalorder %s11, 3
      %p131 = pnand %p129, %p130
      %p132 = pneg %p131
      // Predicated region
      $region9: #{outconv_forward.1} parent=5 // pred_check
        _
      $region10: #{outconv_forward.1} parent=5 // pred_check_branch
        %134 = sbr.rel (%p131) target = $region12
      $region11: #{outconv_forward.1} parent=5 // pred_region
        %s135 = ssub.s32 %s11, 1
        // Predicated region
        $region13: #{outconv_forward.1} parent=11 // pred_check
          %p136 = pneg %p44
        $region14: #{outconv_forward.1} parent=11 // pred_check_branch
          %138 = sbr.rel (%p136) target = $region16
        $region15: #{outconv_forward.1} parent=11 // pred_region
          %s140 = ssub.s32 64, 64
          %141 = vsyncadd [#allocation3], %s140
          %s143 = sshll.u32 %s0, 4
          %s144 = int_to_ptr.vmem [resolvable:$true] %s143
          %146 = dma.vmem_to_smem %s144, 64, [#allocation2], [#allocation3]
        $region16: #{outconv_forward.1} parent=11 // pred_fallthru
          _
        // Predicated region
        $region17: #{outconv_forward.1} parent=11 // pred_check
          %p147 = pneg %p65
        $region18: #{outconv_forward.1} parent=11 // pred_check_branch
          %149 = sbr.rel (%p147) target = $region20
        $region19: #{outconv_forward.1} parent=11 // pred_region
          %s151 = ssub.s32 16, 16
          %152 = vsyncadd [#allocation5], %s151
          %s154 = sshll.u32 %s1, 4
          %s155 = int_to_ptr.vmem [resolvable:$true] %s154
          %157 = dma.vmem_to_smem %s155, 16, [#allocation4], [#allocation5]
        $region20: #{outconv_forward.1} parent=11 // pred_fallthru
          _
      $region12: #{outconv_forward.1} parent=5 // pred_fallthru
        _
      %p158 = scmp.lt.s32.totalorder %s11, 2
      // Predicated region
      $region21: #{outconv_forward.1} parent=5 // pred_check
        %p159 = pneg %p158
      $region22: #{outconv_forward.1} parent=5 // pred_check_branch
        %161 = sbr.rel (%p159) target = $region24
      $region23: #{outconv_forward.1} parent=5 // pred_region
        // Predicated region
        $region25: #{outconv_forward.1} parent=23 // pred_check
          %p162 = pneg %p87
        $region26: #{outconv_forward.1} parent=23 // pred_check_branch
          %164 = sbr.rel (%p162) target = $region28
        $region27: #{outconv_forward.1} parent=23 // pred_region
          %p165 = scmp.lt.s32.totalorder %s18, 1
          %s166 = scalar_select %p165, %s18, 1
          %p167 = scmp.lt.s32.totalorder %s19, 0
          %s168 = scalar_select %p167, %s19, 0
          %s169 = smul.addr %s166, 4
          %s170 = sadd.s32 %s168, %s169
          %s171 = smul.addr %s170, 2
          %s172 = scalar_lea.vmem %s2, %s171
        $region28: #{outconv_forward.1} parent=23 // pred_fallthru
          _
      $region24: #{outconv_forward.1} parent=5 // pred_fallthru
        _
      %p173 = scmp.le.s32.totalorder 1, %s11
      %p174 = scmp.lt.s32.totalorder %s11, 3
      %p175 = pnand %p173, %p174
      %p176 = pneg %p175
      // Predicated region
      $region29: #{outconv_forward.1} parent=5 // pred_check
        _
      $region30: #{outconv_forward.1} parent=5 // pred_check_branch
        %178 = sbr.rel (%p175) target = $region32
      $region31: #{outconv_forward.1} parent=5 // pred_region
        %s179 = ssub.s32 %s11, 1
        // Predicated region
        $region33: #{outconv_forward.1} parent=31 // pred_check
          %p180 = pneg %p44
        $region34: #{outconv_forward.1} parent=31 // pred_check_branch
          %182 = sbr.rel (%p180) target = $region36
        $region35: #{outconv_forward.1} parent=31 // pred_region
          %183 = dma.done [#allocation3], 64
        $region36: #{outconv_forward.1} parent=31 // pred_fallthru
          _
        // Predicated region
        $region37: #{outconv_forward.1} parent=31 // pred_check
          %p184 = pneg %p65
        $region38: #{outconv_forward.1} parent=31 // pred_check_branch
          %186 = sbr.rel (%p184) target = $region40
        $region39: #{outconv_forward.1} parent=31 // pred_region
          %187 = dma.done [#allocation5], 16
        $region40: #{outconv_forward.1} parent=31 // pred_fallthru
          _
        %188 = sfence
        %p189 = pneg %p44
        %p190 = pneg %p41
        %p191 = pneg %p65
        %p192 = pneg %p62
        %p193 = scmp.lt.s32.totalorder %s20, 1
        %s194 = scalar_select %p193, %s20, 1
        %p195 = scmp.lt.s32.totalorder %s21, 0
        %s196 = scalar_select %p195, %s21, 0
        %s197 = smul.addr %s194, 4
        %s198 = sadd.s32 %s196, %s197
        %s199 = smul.addr %s198, 2
        %s200 = scalar_lea.vmem %s2, %s199
        %p201 = pneg %p93
        %p202 = pneg %p90
        %p203 = pneg %p121
        %p204 = pneg %p118
        %p205 = scmp.lt.s32.totalorder %s20, 1
        %s206 = scalar_select %p205, %s20, 1
        %p207 = scmp.lt.s32.totalorder %s21, 0
        %s208 = scalar_select %p207, %s21, 0
        %s209 = smul.addr %s206, 3
        %s210 = sadd.s32 %s208, %s209
        %s211 = smul.addr %s210, 2
        %s212 = scalar_lea.vmem %s3, %s211
        %p213 = scmp.lt.s32.totalorder %s20, 1
        %s214 = scalar_select %p213, %s20, 1
        %p215 = scmp.lt.s32.totalorder %s21, 0
        %s216 = scalar_select %p215, %s21, 0
        %s217 = smul.addr %s214, 4
        %s218 = sadd.s32 %s216, %s217
        %s219 = smul.addr %s218, 2
        %s220 = scalar_lea.vmem %s2, %s219
        %p221 = scmp.lt.s32.totalorder %s20, 1
        %s222 = scalar_select %p221, %s20, 1
        %p223 = scmp.lt.s32.totalorder %s21, 0
        %s224 = scalar_select %p223, %s21, 0
        %s225 = smul.addr %s222, 3
        %s226 = sadd.s32 %s224, %s225
        %s227 = smul.addr %s226, 2
        %s228 = scalar_lea.vmem %s3, %s227
        %v229 = vld [vmem:[%s220] sm:$0x3]
        %s230 = sld [smem:[#allocation2]]
        %v231 = vstv %s230
        %v232 = vmul.f32 %v231, %v229
        %s233 = sld [smem:[#allocation2 + $0x80]]
        %v234 = vstv %s233
        %v235 = vmul.f32 %v234, %v229
        %s236 = sld [smem:[#allocation2 + $0x100]]
        %v237 = vstv %s236
        %v238 = vmul.f32 %v237, %v229
        %s239 = scalar_lea.vmem %s220, 2
        %v240 = vld [vmem:[%s239] sm:$0x3]
        %s241 = sld [smem:[#allocation2 + $0x1]]
        %v242 = vstv %s241
        %v243 = vmul.f32 %v242, %v240
        %v244 = vadd.f32 %v232, %v243
        %s245 = sld [smem:[#allocation2 + $0x81]]
        %v246 = vstv %s245
        %v247 = vmul.f32 %v246, %v240
        %v248 = vadd.f32 %v235, %v247
        %s249 = sld [smem:[#allocation2 + $0x101]]
        %v250 = vstv %s249
        %v251 = vmul.f32 %v250, %v240
        %v252 = vadd.f32 %v238, %v251
        %s253 = scalar_lea.vmem %s220, 4
        %v254 = vld [vmem:[%s253] sm:$0x3]
        %s255 = sld [smem:[#allocation2 + $0x2]]
        %v256 = vstv %s255
        %v257 = vmul.f32 %v256, %v254
        %v258 = vadd.f32 %v244, %v257
        %s259 = sld [smem:[#allocation2 + $0x82]]
        %v260 = vstv %s259
        %v261 = vmul.f32 %v260, %v254
        %v262 = vadd.f32 %v248, %v261
        %s263 = sld [smem:[#allocation2 + $0x102]]
        %v264 = vstv %s263
        %v265 = vmul.f32 %v264, %v254
        %v266 = vadd.f32 %v252, %v265
        %s267 = scalar_lea.vmem %s220, 6
        %v268 = vld [vmem:[%s267] sm:$0x3]
        %s269 = sld [smem:[#allocation2 + $0x3]]
        %v270 = vstv %s269
        %v271 = vmul.f32 %v270, %v268
        %v272 = vadd.f32 %v258, %v271
        %s273 = sld [smem:[#allocation2 + $0x83]]
        %v274 = vstv %s273
        %v275 = vmul.f32 %v274, %v268
        %v276 = vadd.f32 %v262, %v275
        %s277 = sld [smem:[#allocation2 + $0x103]]
        %v278 = vstv %s277
        %v279 = vmul.f32 %v278, %v268
        %v280 = vadd.f32 %v266, %v279
        %s281 = sld [smem:[#allocation4]]
        %v282 = vstv %s281
        %v283 = vadd.f32 %v272, %v282
        %284 = vst [vmem:[%s228] sm:$0x3] %v283
        %s285 = sld [smem:[#allocation4 + $0x1]]
        %v286 = vstv %s285
        %v287 = vadd.f32 %v276, %v286
        %s288 = scalar_lea.vmem %s228, 2
        %289 = vst [vmem:[%s288] sm:$0x3] %v287
        %s290 = sld [smem:[#allocation4 + $0x2]]
        %v291 = vstv %s290
        %v292 = vadd.f32 %v280, %v291
        %s293 = scalar_lea.vmem %s228, 4
        %294 = vst [vmem:[%s293] sm:$0x3] %v292
        %p295 = scmp.lt.s32.totalorder %s20, 1
        %s296 = scalar_select %p295, %s20, 1
        %p297 = scmp.lt.s32.totalorder %s21, 0
        %s298 = scalar_select %p297, %s21, 0
        %s299 = smul.addr %s296, 3
        %s300 = sadd.s32 %s298, %s299
        %s301 = smul.addr %s300, 2
        %s302 = scalar_lea.vmem %s3, %s301
        // Predicated region
        $region41: #{outconv_forward.1} parent=31 // pred_check
          %p303 = pneg %p118
        $region42: #{outconv_forward.1} parent=31 // pred_check_branch
          %305 = sbr.rel (%p303) target = $region44
        $region43: #{outconv_forward.1} parent=31 // pred_region
          _
        $region44: #{outconv_forward.1} parent=31 // pred_fallthru
          _
      $region32: #{outconv_forward.1} parent=5 // pred_fallthru
        _
      %p306 = scmp.le.s32.totalorder 2, %s11
      // Predicated region
      $region45: #{outconv_forward.1} parent=5 // pred_check
        %p307 = pneg %p306
      $region46: #{outconv_forward.1} parent=5 // pred_check_branch
        %309 = sbr.rel (%p307) target = $region48
      $region47: #{outconv_forward.1} parent=5 // pred_region
        %s310 = ssub.s32 %s11, 2
        // Predicated region
        $region49: #{outconv_forward.1} parent=47 // pred_check
          %p311 = pneg %p124
        $region50: #{outconv_forward.1} parent=47 // pred_check_branch
          %313 = sbr.rel (%p311) target = $region52
        $region51: #{outconv_forward.1} parent=47 // pred_region
          %p314 = scmp.lt.s32.totalorder %s22, 1
          %s315 = scalar_select %p314, %s22, 1
          %p316 = scmp.lt.s32.totalorder %s23, 0
          %s317 = scalar_select %p316, %s23, 0
          %s318 = smul.addr %s315, 3
          %s319 = sadd.s32 %s317, %s318
          %s320 = smul.addr %s319, 2
          %s321 = scalar_lea.vmem %s3, %s320
        $region52: #{outconv_forward.1} parent=47 // pred_fallthru
          _
      $region48: #{outconv_forward.1} parent=5 // pred_fallthru
        _
    $region6: #{outconv_forward.1} parent=1 // loop_footer
      %s15 = sadd.s32 1, %s11
    $region7: #{outconv_forward.1} parent=1 // loop_footer_branch
      %10 = sbr.rel target = $region3
    $region8: #{outconv_forward.1} parent=1 // loop_exit
      _
    %322 = vsyncpa [#allocation3], 1
    %s323 = scalar_lea.sflag [#allocation3], 1
    %324 = vsyncpa %s323, 1
    %325 = vsyncpa [#allocation5], 1

</llo_original>
